<compile_context>
chip_gen: v6e
topology: v6e:2x2x1
jax: 0.10.0
libtpu: 0.0.40
codegen_flags: <defaults>
</compile_context>

<pallas_src>
import functools

import jax
import jax.numpy as jnp
from jax.experimental import pallas as pl
from jax.experimental.pallas import tpu as pltpu


def _pick_row_tile(h_out, stride, ks, wpc, wcout, in_itemsize, out_itemsize):
    """Largest output-row tile TH that divides h_out while keeping the
    double-buffered (input + output + f32 acc) tiles a few MiB at most —
    comfortably inside the 32 MiB scoped-VMEM default and v7x's 64 MiB
    physical VMEM.  Prefer >= 2 row tiles so the (batch, rows) grid has real
    pipeline depth and both v7x TensorCores get work even when N is small."""
    budget = 4 << 20  # bytes per grid step (x2 double-buffering stays < 8 MiB)

    def tile_bytes(th):
        rows_in = (th - 1) * stride + ks
        return rows_in * wpc * in_itemsize + th * wcout * (out_itemsize + 4)

    best = 1
    for cand in range(1, h_out + 1):
        if h_out % cand == 0 and tile_bytes(cand) <= budget:
            best = cand
    if best == h_out and h_out >= 16:
        for cand in range(h_out // 2, 0, -1):
            if h_out % cand == 0 and tile_bytes(cand) <= budget:
                return cand
    return best


def _build_band_weights(weight, ks, stride, c_in, c_out, wp, w_out):
    """Expand (Cout, Cin, KH, KW) conv weights into KH banded matrices of
    shape (Wp*Cin, Wout*Cout) so the whole W x Cin -> W x Cout contraction is
    one lane-dense matmul per kh tap."""
    w_t = jnp.transpose(weight, (2, 3, 1, 0)).astype(jnp.float32)  # (KH,KW,Cin,Cout)
    kh = kw = ks
    band = jnp.zeros((kh, wp * c_in, w_out * c_out), jnp.float32)

    w_idx = jnp.arange(w_out)[:, None, None, None]   # (Wout,1,1,1)
    kw_idx = jnp.arange(kw)[None, :, None, None]     # (1,KW,1,1)
    ci_idx = jnp.arange(c_in)[None, None, :, None]   # (1,1,Cin,1)
    co_idx = jnp.arange(c_out)[None, None, None, :]  # (1,1,1,Cout)

    rows = (w_idx * stride + kw_idx) * c_in + ci_idx  # input column index
    cols = w_idx * c_out + co_idx                     # output column index
    shape = (w_out, kw, c_in, c_out)
    rows_b = jnp.broadcast_to(rows, shape)
    cols_b = jnp.broadcast_to(cols, shape)
    vals = jnp.broadcast_to(w_t[:, None, :, :, :], (kh,) + shape)

    return band.at[:, rows_b, cols_b].set(vals)


def _make_conv_kernel(th, n_kh, stride):
    """Pallas kernel: TH output rows = sum_kh  x_rows(kh) @ band[kh] + bias."""

    def kernel(x_ref, w_ref, b_ref, o_ref):
        # x_ref: (rows_in, Wp*Cin)        compute dtype (bf16)
        # w_ref: (KH, Wp*Cin, Wout*Cout)  compute dtype
        # b_ref: (1, Wout*Cout)           f32 (bias tiled over W)
        # o_ref: (TH, Wout*Cout)          output dtype (lane-dense last dim)
        acc = jnp.broadcast_to(b_ref[...], o_ref.shape).astype(jnp.float32)
        for kh in range(n_kh):  # small static unrolled loop: KH matmul pushes
            if stride == 1:
                xs = x_ref[pl.ds(kh, th), :]
            else:
                xs = x_ref[pl.ds(kh, th, stride=stride), :]
            acc = acc + jnp.dot(xs, w_ref[kh],
                                preferred_element_type=jnp.float32)
        o_ref[...] = acc.astype(o_ref.dtype)

    return kernel


@functools.partial(jax.jit,
                   static_argnames=("kernel_size", "stride", "compute_dtype"))
def convlayer_forward(x_nchw, weight, bias, *, kernel_size=1, stride=1,
                      compute_dtype=jnp.bfloat16):
    """Forward pass of Convlayer.

    x_nchw: (N, Cin, H, W) float32
    weight: (Cout, Cin, KH, KW)  (PyTorch Conv2d layout)
    bias:   (Cout,)
    returns (N, Cout, Hout, Wout), same dtype as x_nchw.
    """
    n, c_in, h, w = x_nchw.shape
    c_out = weight.shape[0]
    ks = kernel_size
    pad = ks // 2
    if pad >= h or pad >= w:
        raise ValueError("ReflectionPad2d requires padding < spatial size "
                         f"(pad={pad}, H={h}, W={w})")

    # ---- glue (index shuffles only): bf16 cast, NCHW->NHWC, reflect pad ----
    x_nhwc = jnp.transpose(x_nchw.astype(compute_dtype), (0, 2, 3, 1))
    if pad > 0:
        x_nhwc = jnp.pad(x_nhwc, ((0, 0), (pad, pad), (pad, pad), (0, 0)),
                         mode="reflect")
    hp, wp = h + 2 * pad, w + 2 * pad
    h_out = (hp - ks) // stride + 1
    w_out = (wp - ks) // stride + 1

    wpc = wp * c_in          # lane-flattened padded input width
    wcout = w_out * c_out    # lane-flattened output width (lane-dense)

    th = _pick_row_tile(h_out, stride, ks, wpc, wcout,
                        jnp.dtype(compute_dtype).itemsize,
                        jnp.dtype(x_nchw.dtype).itemsize)
    n_tiles = h_out // th
    rows_in = (th - 1) * stride + ks  # input rows per tile incl. halo

    # Row-tiled input slab with halo: (N, n_tiles, rows_in, Wp*Cin).
    # (Halo rows are duplicated in HBM; overhead is (KH-stride)/(TH*stride).)
    x_flat = x_nhwc.reshape(n, hp, wpc)
    row_idx = (jnp.arange(n_tiles) * (th * stride))[:, None] \
        + jnp.arange(rows_in)[None, :]
    x_slab = x_flat[:, row_idx, :]

    band = _build_band_weights(weight, ks, stride, c_in, c_out,
                               wp, w_out).astype(compute_dtype)
    bias_flat = jnp.tile(bias.astype(jnp.float32), w_out).reshape(1, wcout)

    kernel = _make_conv_kernel(th, ks, stride)

    out_tiled = pl.pallas_call(
        kernel,
        out_shape=jax.ShapeDtypeStruct((n, n_tiles, th, wcout), x_nchw.dtype),
        grid_spec=pltpu.PrefetchScalarGridSpec(
            num_scalar_prefetch=0,
            grid=(n, n_tiles),
            in_specs=[
                pl.BlockSpec((None, None, rows_in, wpc),
                             lambda b, t: (b, t, 0, 0)),
                pl.BlockSpec((ks, wpc, wcout), lambda b, t: (0, 0, 0)),
                pl.BlockSpec((1, wcout), lambda b, t: (0, 0)),
            ],
            out_specs=pl.BlockSpec((None, None, th, wcout),
                                   lambda b, t: (b, t, 0, 0)),
        ),
        compiler_params=pltpu.CompilerParams(
            dimension_semantics=("parallel", "parallel")),
    )(x_slab, band, bias_flat)

    # ---- glue: (N, tiles, TH, Wout*Cout) -> NCHW ----
    out_nhwc = out_tiled.reshape(n, h_out, w_out, c_out)
    return jnp.transpose(out_nhwc, (0, 3, 1, 2))


def _reference_forward(x_nchw, weight, bias, kernel_size, stride):
    """Pure-JAX f32 reference (reflection pad + conv) for correctness check."""
    pad = kernel_size // 2
    xp = jnp.pad(x_nchw, ((0, 0), (0, 0), (pad, pad), (pad, pad)),
                 mode="reflect")
    y = jax.lax.conv_general_dilated(
        xp, weight, window_strides=(stride, stride), padding="VALID",
        dimension_numbers=("NCHW", "OIHW", "NCHW"))
    return y + bias[None, :, None, None]


if __name__ == "__main__":
    # Mirrors Convlayer(in_channels=4, out_channels=8, kernel_size=3,
    # stride=1) applied to a (2, 4, 16, 16) input.
    N, C_IN, H, W = 2, 4, 16, 16
    C_OUT, KS, STRIDE = 8, 3, 1

    key = jax.random.PRNGKey(0)
    kx, kwt, kb = jax.random.split(key, 3)
    x = jax.random.normal(kx, (N, C_IN, H, W), dtype=jnp.float32)
    fan_in = C_IN * KS * KS
    bound = 1.0 / (fan_in ** 0.5)
    weight = jax.random.uniform(kwt, (C_OUT, C_IN, KS, KS),
                                minval=-bound, maxval=bound,
                                dtype=jnp.float32)
    bias = jax.random.uniform(kb, (C_OUT,), minval=-bound, maxval=bound,
                              dtype=jnp.float32)

    out = convlayer_forward(x, weight, bias, kernel_size=KS, stride=STRIDE)
    out = jax.block_until_ready(out)

    # Tight check against a reference fed the same bf16-rounded operands
    # (isolates kernel correctness from the deliberate bf16 quantization).
    xq = x.astype(jnp.bfloat16).astype(jnp.float32)
    wq = weight.astype(jnp.bfloat16).astype(jnp.float32)
    ref_q = _reference_forward(xq, wq, bias, KS, STRIDE)
    # Loose check against the full-precision f32 reference.
    ref = _reference_forward(x, weight, bias, KS, STRIDE)

    assert out.shape == ref.shape, (out.shape, ref.shape)
    assert jnp.allclose(out, ref_q, atol=2e-3, rtol=2e-3), (
        float(jnp.max(jnp.abs(out - ref_q))))
    assert jnp.allclose(out, ref, atol=5e-2, rtol=5e-2), (
        float(jnp.max(jnp.abs(out - ref))))

    print("KERNEL_OK")
</pallas_src>

<mosaic_0001>
module attributes {stable_mosaic.version = 11 : i64} {
  func.func @kernel(%arg0: i32, %arg1: i32, %arg2: memref<1x1x10x72xbf16, #tpu.memory_space<vmem>>, %arg3: memref<3x72x128xbf16, #tpu.memory_space<vmem>>, %arg4: memref<1x128xf32, #tpu.memory_space<vmem>>, %arg5: memref<1x1x8x128xf32, #tpu.memory_space<vmem>>) attributes {dimension_semantics = [#tpu.dimension_semantics<parallel>, #tpu.dimension_semantics<parallel>], iteration_bounds = array<i64: 2, 2>, scalar_prefetch = 0 : i64, scratch_operands = 0 : i64, tpu.core_type = #tpu.core_type<tc>, window_params = [{transform_indices = @transform_0, window_bounds = array<i64: 1, 1, 10, 72>}, {pipeline_mode = #tpu.pipeline_mode<synchronous>, transform_indices = @transform_1, window_bounds = array<i64: 3, 72, 128>}, {pipeline_mode = #tpu.pipeline_mode<synchronous>, transform_indices = @transform_2, window_bounds = array<i64: 1, 128>}, {transform_indices = @transform_3, window_bounds = array<i64: 1, 1, 8, 128>}]} {
    %c0 = arith.constant 0 : index
    %c0_0 = arith.constant 0 : index
    %0 = vector.load %arg4[%c0, %c0_0] : memref<1x128xf32, #tpu.memory_space<vmem>>, vector<1x128xf32>
    %1 = vector.shape_cast %0 : vector<1x128xf32> to vector<1x128xf32>
    %2 = vector.broadcast %1 : vector<1x128xf32> to vector<8x128xf32>
    %c0_1 = arith.constant 0 : index
    %c0_2 = arith.constant 0 : index
    %c0_3 = arith.constant 0 : index
    %c0_4 = arith.constant 0 : index
    %3 = vector.load %arg2[%c0_1, %c0_2, %c0_3, %c0_4] : memref<1x1x10x72xbf16, #tpu.memory_space<vmem>>, vector<1x1x8x72xbf16>
    %4 = vector.shape_cast %3 : vector<1x1x8x72xbf16> to vector<8x72xbf16>
    %c0_5 = arith.constant 0 : index
    %c0_6 = arith.constant 0 : index
    %c0_7 = arith.constant 0 : index
    %5 = vector.load %arg3[%c0_5, %c0_6, %c0_7] : memref<3x72x128xbf16, #tpu.memory_space<vmem>>, vector<1x72x128xbf16>
    %6 = vector.shape_cast %5 : vector<1x72x128xbf16> to vector<72x128xbf16>
    %cst = arith.constant dense<0.000000e+00> : vector<8x128xf32>
    %7 = tpu.matmul %4, %6, %cst {dimension_numbers = #tpu.dot_dimension_numbers<[1], [0], [0], [1], [0, 0, 1, 1], [], []>} : vector<8x72xbf16>, vector<72x128xbf16>, vector<8x128xf32> -> vector<8x128xf32>
    %8 = arith.addf %2, %7 : vector<8x128xf32>
    %c0_8 = arith.constant 0 : index
    %c0_9 = arith.constant 0 : index
    %c1 = arith.constant 1 : index
    %c0_10 = arith.constant 0 : index
    %9 = vector.load %arg2[%c0_8, %c0_9, %c1, %c0_10] : memref<1x1x10x72xbf16, #tpu.memory_space<vmem>>, vector<1x1x8x72xbf16>
    %10 = vector.shape_cast %9 : vector<1x1x8x72xbf16> to vector<8x72xbf16>
    %c1_11 = arith.constant 1 : index
    %c0_12 = arith.constant 0 : index
    %c0_13 = arith.constant 0 : index
    %11 = vector.load %arg3[%c1_11, %c0_12, %c0_13] : memref<3x72x128xbf16, #tpu.memory_space<vmem>>, vector<1x72x128xbf16>
    %12 = vector.shape_cast %11 : vector<1x72x128xbf16> to vector<72x128xbf16>
    %cst_14 = arith.constant dense<0.000000e+00> : vector<8x128xf32>
    %13 = tpu.matmul %10, %12, %cst_14 {dimension_numbers = #tpu.dot_dimension_numbers<[1], [0], [0], [1], [0, 0, 1, 1], [], []>} : vector<8x72xbf16>, vector<72x128xbf16>, vector<8x128xf32> -> vector<8x128xf32>
    %14 = arith.addf %8, %13 : vector<8x128xf32>
    %c0_15 = arith.constant 0 : index
    %c0_16 = arith.constant 0 : index
    %c2 = arith.constant 2 : index
    %c0_17 = arith.constant 0 : index
    %15 = vector.load %arg2[%c0_15, %c0_16, %c2, %c0_17] : memref<1x1x10x72xbf16, #tpu.memory_space<vmem>>, vector<1x1x8x72xbf16>
    %16 = vector.shape_cast %15 : vector<1x1x8x72xbf16> to vector<8x72xbf16>
    %c2_18 = arith.constant 2 : index
    %c0_19 = arith.constant 0 : index
    %c0_20 = arith.constant 0 : index
    %17 = vector.load %arg3[%c2_18, %c0_19, %c0_20] : memref<3x72x128xbf16, #tpu.memory_space<vmem>>, vector<1x72x128xbf16>
    %18 = vector.shape_cast %17 : vector<1x72x128xbf16> to vector<72x128xbf16>
    %cst_21 = arith.constant dense<0.000000e+00> : vector<8x128xf32>
    %19 = tpu.matmul %16, %18, %cst_21 {dimension_numbers = #tpu.dot_dimension_numbers<[1], [0], [0], [1], [0, 0, 1, 1], [], []>} : vector<8x72xbf16>, vector<72x128xbf16>, vector<8x128xf32> -> vector<8x128xf32>
    %20 = arith.addf %14, %19 : vector<8x128xf32>
    %c0_22 = arith.constant 0 : index
    %c0_23 = arith.constant 0 : index
    %c0_24 = arith.constant 0 : index
    %c0_25 = arith.constant 0 : index
    %21 = vector.load %arg5[%c0_22, %c0_23, %c0_24, %c0_25] : memref<1x1x8x128xf32, #tpu.memory_space<vmem>>, vector<1x1x8x128xf32>
    %22 = vector.shape_cast %21 : vector<1x1x8x128xf32> to vector<8x128xf32>
    %23 = vector.shape_cast %20 : vector<8x128xf32> to vector<1x1x8x128xf32>
    tpu.vector_store %arg5[%c0_22, %c0_23, %c0_24, %c0_25], %23 {strides = array<i32>} : memref<1x1x8x128xf32, #tpu.memory_space<vmem>>, vector<1x1x8x128xf32>,
    return
  }
  func.func @transform_0(%arg0: i32, %arg1: i32) -> (i32, i32, i32, i32) {
    %c0_i32 = arith.constant 0 : i32
    %c0_i32_0 = arith.constant 0 : i32
    %c0_i32_1 = arith.constant 0 : i32
    return %arg0, %arg1, %c0_i32, %c0_i32_0 : i32, i32, i32, i32
  }
  func.func @transform_1(%arg0: i32, %arg1: i32) -> (i32, i32, i32) {
    %c0_i32 = arith.constant 0 : i32
    %c0_i32_0 = arith.constant 0 : i32
    %c0_i32_1 = arith.constant 0 : i32
    %c0_i32_2 = arith.constant 0 : i32
    return %c0_i32, %c0_i32_0, %c0_i32_1 : i32, i32, i32
  }
  func.func @transform_2(%arg0: i32, %arg1: i32) -> (i32, i32) {
    %c0_i32 = arith.constant 0 : i32
    %c0_i32_0 = arith.constant 0 : i32
    %c0_i32_1 = arith.constant 0 : i32
    return %c0_i32, %c0_i32_0 : i32, i32
  }
  func.func @transform_3(%arg0: i32, %arg1: i32) -> (i32, i32, i32, i32) {
    %c0_i32 = arith.constant 0 : i32
    %c0_i32_0 = arith.constant 0 : i32
    %c0_i32_1 = arith.constant 0 : i32
    return %arg0, %arg1, %c0_i32, %c0_i32_0 : i32, i32, i32, i32
  }
}

</mosaic_0001>

<llo_original>
// kernel: tile.8
$region0: #{tile.8}
  #allocation0 [shape = 's32[1]{0}', space=sflag, size = 0x4, scoped, tag = 'scoped memory for tile.8']
  %s0 = inlined_call_operand.vmem [shape: f32[8], index: 0, kind: input, shape index: {}]
  %s1 = inlined_call_operand.vmem [shape: f32[16,8], index: 1, kind: output, shape index: {}]
  // Predicated region
  $region2: #{tile.8} parent=0 // pred_check
    _
  $region3: #{tile.8} parent=0 // pred_check_branch
    %3 = sbr.rel (0) target = $region5
  $region4: #{tile.8} parent=0 // pred_region
    _
  $region5: #{tile.8} parent=0 // pred_fallthru
    _
  %v4 = vld [vmem:[%s0] ss:$0 sm:$0xff]
  %5 = vst [vmem:[%s1] sm:$0xff] %v4
  %s6 = scalar_lea.vmem %s1, 8
  %7 = vst [vmem:[%s6] sm:$0xff] %v4

// kernel: tile.9
$region0: #{tile.9}
  %s0 = inlined_call_operand.vmem [shape: f32[16,8], index: 0, kind: input, shape index: {}]
  %s1 = inlined_call_operand.vmem [shape: f32[1,128], index: 1, kind: output, shape index: {}]
  $region1: #{tile.9} parent=0
    #allocation0 [shape = 'u8[4096]{0}', space=vmem, size = 0x1000, scoped, tag = 'scoped mem for output reshape']
    %v2 = vld [vmem:[%s0] sm:$0x1]
    %vm3 = vcmask 64512
    %4 = vst.msk [vmem:[#allocation0] sm:$0x1] %vm3, %v2
    %s5 = scalar_lea.vmem %s0, 15
    %v6 = vld [vmem:[%s5] sm:$0x1]
    %7 = vrot.lane.b32.xlu0 %v6, 120
    %v8 = vpop.permute.xlu0 %7
    %vm9 = vcmask 1048512
    %10 = vst.msk [vmem:[#allocation0] sm:$0x1] %vm9, %v8
    %s11 = scalar_lea.vmem %s0, 14
    %v12 = vld [vmem:[%s11] sm:$0x1]
    %13 = vrot.lane.b32.xlu0 %v12, 112
    %v14 = vpop.permute.xlu0 %13
    %vm15 = vcmask 982912
    %16 = vst.msk [vmem:[#allocation0] sm:$0x1] %vm15, %v14
    %s17 = scalar_lea.vmem %s0, 13
    %v18 = vld [vmem:[%s17] sm:$0x1]
    %19 = vrot.lane.b32.xlu0 %v18, 104
    %v20 = vpop.permute.xlu0 %19
    %vm21 = vcmask 917312
    %22 = vst.msk [vmem:[#allocation0] sm:$0x1] %vm21, %v20
    %s23 = scalar_lea.vmem %s0, 12
    %v24 = vld [vmem:[%s23] sm:$0x1]
    %25 = vrot.lane.b32.xlu0 %v24, 96
    %v26 = vpop.permute.xlu0 %25
    %vm27 = vcmask 851712
    %28 = vst.msk [vmem:[#allocation0] sm:$0x1] %vm27, %v26
    %s29 = scalar_lea.vmem %s0, 11
    %v30 = vld [vmem:[%s29] sm:$0x1]
    %31 = vrot.lane.b32.xlu0 %v30, 88
    %v32 = vpop.permute.xlu0 %31
    %vm33 = vcmask 786112
    %34 = vst.msk [vmem:[#allocation0] sm:$0x1] %vm33, %v32
    %s35 = scalar_lea.vmem %s0, 10
    %v36 = vld [vmem:[%s35] sm:$0x1]
    %37 = vrot.lane.b32.xlu0 %v36, 80
    %v38 = vpop.permute.xlu0 %37
    %vm39 = vcmask 720512
    %40 = vst.msk [vmem:[#allocation0] sm:$0x1] %vm39, %v38
    %s41 = scalar_lea.vmem %s0, 9
    %v42 = vld [vmem:[%s41] sm:$0x1]
    %43 = vrot.lane.b32.xlu0 %v42, 72
    %v44 = vpop.permute.xlu0 %43
    %vm45 = vcmask 654912
    %46 = vst.msk [vmem:[#allocation0] sm:$0x1] %vm45, %v44
    %s47 = scalar_lea.vmem %s0, 8
    %v48 = vld [vmem:[%s47] sm:$0x1]
    %49 = vrot.lane.b32.xlu0 %v48, 64
    %v50 = vpop.permute.xlu0 %49
    %vm51 = vcmask 589312
    %52 = vst.msk [vmem:[#allocation0] sm:$0x1] %vm51, %v50
    %s53 = scalar_lea.vmem %s0, 7
    %v54 = vld [vmem:[%s53] sm:$0x1]
    %55 = vrot.lane.b32.xlu0 %v54, 56
    %v56 = vpop.permute.xlu0 %55
    %vm57 = vcmask 523712
    %58 = vst.msk [vmem:[#allocation0] sm:$0x1] %vm57, %v56
    %s59 = scalar_lea.vmem %s0, 6
    %v60 = vld [vmem:[%s59] sm:$0x1]
    %61 = vrot.lane.b32.xlu0 %v60, 48
    %v62 = vpop.permute.xlu0 %61
    %vm63 = vcmask 458112
    %64 = vst.msk [vmem:[#allocation0] sm:$0x1] %vm63, %v62
    %s65 = scalar_lea.vmem %s0, 5
    %v66 = vld [vmem:[%s65] sm:$0x1]
    %67 = vrot.lane.b32.xlu0 %v66, 40
    %v68 = vpop.permute.xlu0 %67
    %vm69 = vcmask 392512
    %70 = vst.msk [vmem:[#allocation0] sm:$0x1] %vm69, %v68
    %s71 = scalar_lea.vmem %s0, 4
    %v72 = vld [vmem:[%s71] sm:$0x1]
    %73 = vrot.lane.b32.xlu0 %v72, 32
    %v74 = vpop.permute.xlu0 %73
    %vm75 = vcmask 326912
    %76 = vst.msk [vmem:[#allocation0] sm:$0x1] %vm75, %v74
    %s77 = scalar_lea.vmem %s0, 3
    %v78 = vld [vmem:[%s77] sm:$0x1]
    %79 = vrot.lane.b32.xlu0 %v78, 24
    %v80 = vpop.permute.xlu0 %79
    %vm81 = vcmask 261312
    %82 = vst.msk [vmem:[#allocation0] sm:$0x1] %vm81, %v80
    %s83 = scalar_lea.vmem %s0, 2
    %v84 = vld [vmem:[%s83] sm:$0x1]
    %85 = vrot.lane.b32.xlu0 %v84, 16
    %v86 = vpop.permute.xlu0 %85
    %vm87 = vcmask 195712
    %88 = vst.msk [vmem:[#allocation0] sm:$0x1] %vm87, %v86
    %s89 = scalar_lea.vmem %s0, 1
    %v90 = vld [vmem:[%s89] sm:$0x1]
    %91 = vrot.lane.b32.xlu0 %v90, 8
    %v92 = vpop.permute.xlu0 %91
    %vm93 = vcmask 130112
    %94 = vst.msk [vmem:[#allocation0] sm:$0x1] %vm93, %v92
    %s96 = sshll.u32 1, 1
    %s97 = ssub.s32 %s96, 1
    %v99 = vld [vmem:[#allocation0] sm:%s97]
    %s100 = sshll.u32 1, 1
    %s101 = ssub.s32 %s100, 1
    %102 = vst [vmem:[%s1] sm:%s101] %v99

// kernel: convlayer_forward.1
$region0: #{convlayer_forward.1}
  #allocation0 [shape = 'u32[]', space=smem, size = 0x4, offset = 0x4, fixed_abs, tag = 'smem constant byte address 0x4 - core index']
  #allocation1 [shape = 'u32[144,128]{1,0:T(1,128)}', space=vmem, size = 0x12000, scoped, tag = 'internal scratch']
  %s0 = inlined_call_operand.vmem [shape: bf16[2,2,10,72], index: 0, kind: input, shape index: {}]
  %s1 = inlined_call_operand.vmem [shape: bf16[3,72,128], index: 1, kind: input, shape index: {}]
  %s2 = inlined_call_operand.vmem [shape: f32[1,128], index: 2, kind: input, shape index: {}]
  %s3 = inlined_call_operand.vmem [shape: f32[2,2,8,128], index: 3, kind: output, shape index: {}]
  %s4 = sld [smem:[#allocation0]]
  $region45: #{convlayer_forward.1} parent=0
    _
  %s6 = ssub.s32 1, %s4
  %s7 = scalar_select 0, %s6, %s4
  loop: start=0, step=1, limit=6
  $region2: #{convlayer_forward.1} parent=0 // loop_pre_header
    _
  $region3: #{convlayer_forward.1} parent=0 // loop_header
    %s9 = sphi 0, %s13
    %p10 = scmp.ge.s32.totalorder %s9, 6
    %s16 = sphi 0, %s28
    %s17 = sphi 0, %s24
    %s18 = sphi 0, %s16
    %s19 = sphi 0, %s17
    %s20 = sphi 0, %s18
    %s21 = sphi 0, %s19
    %s33 = sphi 0, %s35
    %s36 = sphi 0, %s33
    %s37 = sphi 0, %s36
    %s53 = sphi 0, %s37
    %s57 = sphi 0, %s57
    %s59 = sphi 0, %s57
    %s60 = sphi 0, %s59
    %s74 = sphi 0, %s60
    %s78 = sphi 0, %s78
    %s80 = sphi 0, %s78
    %s81 = sphi 0, %s80
    %s95 = sphi 0, %s81
    %s103 = sphi 0, %s105
    %s106 = sphi 0, %s103
    %s107 = sphi 0, %s106
    %s123 = sphi 0, %s107
  $region4: #{convlayer_forward.1} parent=0 // loop_header_branch
    %12 = sbr.rel (%p10) target = $region8
  $region5: #{convlayer_forward.1} parent=0 // loop_body
    %s14 = ssub.s32 %s9, 1
    %s15 = ssub.s32 %s9, 2
    %s22 = sadd.s32 1, %s17
    %p23 = scmp.ge.s32.totalorder %s22, 2
    %s24 = scalar_select %p23, 0, %s22
    %s25 = sadd.s32 1, %s16
    %s26 = scalar_select %p23, %s25, %s16
    %p27 = scmp.ge.s32.totalorder %s26, 2
    %s28 = scalar_select %p27, 0, %s26
    %s29 = ssub.s32 %s16, %s28
    %s30 = ssub.s32 %s17, %s24
    %s31 = sor.u32 %s29, %s30
    %p32 = scmp.eq.s32.totalorder %s31, 0
    %s34 = sadd.s32 %s33, 1
    %s35 = scalar_select %p32, %s33, %s34
    %p38 = pneg %p32
    %p39 = scmp.eq.s32.totalorder %s9, 3
    %p40 = por %p38, %p39
    %p41 = scmp.ne.s32.totalorder %s33, %s36
    %p42 = scmp.eq.s32.totalorder %s9, 0
    %p43 = por %p41, %p42
    %p44 = scmp.ne.s32.totalorder %s33, %s36
    %p45 = scmp.eq.s32.totalorder %s14, 3
    %p46 = por %p44, %p45
    %p47 = scmp.ne.s32.totalorder %s36, %s37
    %p48 = scmp.eq.s32.totalorder %s14, 0
    %p49 = por %p47, %p48
    %p50 = scmp.ne.s32.totalorder %s36, %s37
    %p51 = scmp.eq.s32.totalorder %s15, 3
    %p52 = por %p50, %p51
    %p54 = scmp.ne.s32.totalorder %s37, %s53
    %p55 = scmp.eq.s32.totalorder %s15, 0
    %p56 = por %p54, %p55
    %s58 = sadd.s32 %s57, 1
    %p61 = scmp.eq.s32.totalorder %s9, 3
    %p62 = scmp.ne.s32.totalorder %s57, %s59
    %p63 = scmp.eq.s32.totalorder %s9, 0
    %p64 = por %p62, %p63
    %p65 = scmp.ne.s32.totalorder %s57, %s59
    %p66 = scmp.eq.s32.totalorder %s14, 3
    %p67 = por %p65, %p66
    %p68 = scmp.ne.s32.totalorder %s59, %s60
    %p69 = scmp.eq.s32.totalorder %s14, 0
    %p70 = por %p68, %p69
    %p71 = scmp.ne.s32.totalorder %s59, %s60
    %p72 = scmp.eq.s32.totalorder %s15, 3
    %p73 = por %p71, %p72
    %p75 = scmp.ne.s32.totalorder %s60, %s74
    %p76 = scmp.eq.s32.totalorder %s15, 0
    %p77 = por %p75, %p76
    %s79 = sadd.s32 %s78, 1
    %p82 = scmp.eq.s32.totalorder %s9, 3
    %p83 = scmp.ne.s32.totalorder %s78, %s80
    %p84 = scmp.eq.s32.totalorder %s9, 0
    %p85 = por %p83, %p84
    %p86 = scmp.ne.s32.totalorder %s78, %s80
    %p87 = scmp.eq.s32.totalorder %s14, 3
    %p88 = por %p86, %p87
    %p89 = scmp.ne.s32.totalorder %s80, %s81
    %p90 = scmp.eq.s32.totalorder %s14, 0
    %p91 = por %p89, %p90
    %p92 = scmp.ne.s32.totalorder %s80, %s81
    %p93 = scmp.eq.s32.totalorder %s15, 3
    %p94 = por %p92, %p93
    %p96 = scmp.ne.s32.totalorder %s81, %s95
    %p97 = scmp.eq.s32.totalorder %s15, 0
    %p98 = por %p96, %p97
    %s99 = ssub.s32 %s16, %s28
    %s100 = ssub.s32 %s17, %s24
    %s101 = sor.u32 %s99, %s100
    %p102 = scmp.eq.s32.totalorder %s101, 0
    %s104 = sadd.s32 %s103, 1
    %s105 = scalar_select %p102, %s103, %s104
    %p108 = pneg %p102
    %p109 = scmp.eq.s32.totalorder %s9, 3
    %p110 = por %p108, %p109
    %p111 = scmp.ne.s32.totalorder %s103, %s106
    %p112 = scmp.eq.s32.totalorder %s9, 0
    %p113 = por %p111, %p112
    %p114 = scmp.ne.s32.totalorder %s103, %s106
    %p115 = scmp.eq.s32.totalorder %s14, 3
    %p116 = por %p114, %p115
    %p117 = scmp.ne.s32.totalorder %s106, %s107
    %p118 = scmp.eq.s32.totalorder %s14, 0
    %p119 = por %p117, %p118
    %p120 = scmp.ne.s32.totalorder %s106, %s107
    %p121 = scmp.eq.s32.totalorder %s15, 3
    %p122 = por %p120, %p121
    %p124 = scmp.ne.s32.totalorder %s107, %s123
    %p125 = scmp.eq.s32.totalorder %s15, 0
    %p126 = por %p124, %p125
    %p127 = scmp.le.s32.totalorder 1, %s9
    %p128 = scmp.lt.s32.totalorder %s9, 5
    %p129 = pnand %p127, %p128
    %p130 = pneg %p129
    // Predicated region
    $region9: #{convlayer_forward.1} parent=5 // pred_check
      _
    $region10: #{convlayer_forward.1} parent=5 // pred_check_branch
      %132 = sbr.rel (%p129) target = $region12
    $region11: #{convlayer_forward.1} parent=5 // pred_region
      %s133 = ssub.s32 %s9, 1
      // Predicated region
      $region13: #{convlayer_forward.1} parent=11 // pred_check
        %p134 = pneg %p70
      $region14: #{convlayer_forward.1} parent=11 // pred_check_branch
        %136 = sbr.rel (%p134) target = $region16
      $region15: #{convlayer_forward.1} parent=11 // pred_region
        _
      $region16: #{convlayer_forward.1} parent=11 // pred_fallthru
        _
      // Predicated region
      $region17: #{convlayer_forward.1} parent=11 // pred_check
        %p137 = pneg %p91
      $region18: #{convlayer_forward.1} parent=11 // pred_check_branch
        %139 = sbr.rel (%p137) target = $region20
      $region19: #{convlayer_forward.1} parent=11 // pred_region
        _
      $region20: #{convlayer_forward.1} parent=11 // pred_fallthru
        _
    $region12: #{convlayer_forward.1} parent=5 // pred_fallthru
      _
    %p140 = scmp.lt.s32.totalorder %s9, 4
    // Predicated region
    $region21: #{convlayer_forward.1} parent=5 // pred_check
      %p141 = pneg %p140
    $region22: #{convlayer_forward.1} parent=5 // pred_check_branch
      %143 = sbr.rel (%p141) target = $region24
    $region23: #{convlayer_forward.1} parent=5 // pred_region
      // Predicated region
      $region25: #{convlayer_forward.1} parent=23 // pred_check
        %p144 = pneg %p43
      $region26: #{convlayer_forward.1} parent=23 // pred_check_branch
        %146 = sbr.rel (%p144) target = $region28
      $region27: #{convlayer_forward.1} parent=23 // pred_region
        %p147 = scmp.lt.s32.totalorder %s16, 1
        %s148 = scalar_select %p147, %s16, 1
        %p149 = scmp.lt.s32.totalorder %s17, 1
        %s150 = scalar_select %p149, %s17, 1
        %s151 = smul.addr %s150, 2
        %s152 = smul.addr %s148, 4
        %s153 = sadd.s32 %s151, %s152
        %s154 = smul.addr %s153, 4
        %s155 = scalar_lea.vmem %s0, %s154
      $region28: #{convlayer_forward.1} parent=23 // pred_fallthru
        _
    $region24: #{convlayer_forward.1} parent=5 // pred_fallthru
      _
    %p156 = scmp.le.s32.totalorder 1, %s9
    %p157 = scmp.lt.s32.totalorder %s9, 5
    %p158 = pnand %p156, %p157
    %p159 = pneg %p158
    // Predicated region
    $region29: #{convlayer_forward.1} parent=5 // pred_check
      _
    $region30: #{convlayer_forward.1} parent=5 // pred_check_branch
      %161 = sbr.rel (%p158) target = $region32
    $region31: #{convlayer_forward.1} parent=5 // pred_region
      %s162 = ssub.s32 %s9, 1
      %p163 = scmp.lt.s32.totalorder %s18, 1
      %s164 = scalar_select %p163, %s18, 1
      %p165 = scmp.lt.s32.totalorder %s19, 1
      %s166 = scalar_select %p165, %s19, 1
      %s167 = smul.addr %s166, 2
      %s168 = smul.addr %s164, 4
      %s169 = sadd.s32 %s167, %s168
      %s170 = smul.addr %s169, 4
      %s171 = scalar_lea.vmem %s0, %s170
      %p172 = pneg %p49
      %p173 = pneg %p46
      %p174 = pneg %p70
      %p175 = pneg %p67
      %p176 = pneg %p91
      %p177 = pneg %p88
      %p178 = pneg %p119
      %p179 = pneg %p116
      %p180 = scmp.lt.s32.totalorder %s18, 1
      %s181 = scalar_select %p180, %s18, 1
      %p182 = scmp.lt.s32.totalorder %s19, 1
      %s183 = scalar_select %p182, %s19, 1
      %s184 = smul.addr %s181, 2
      %s185 = sadd.s32 %s183, %s184
      %s186 = smul.addr %s185, 8
      %s187 = scalar_lea.vmem %s3, %s186
      %p188 = scmp.lt.s32.totalorder %s18, 1
      %s189 = scalar_select %p188, %s18, 1
      %p190 = scmp.lt.s32.totalorder %s19, 1
      %s191 = scalar_select %p190, %s19, 1
      %s192 = smul.addr %s191, 2
      %s193 = smul.addr %s189, 4
      %s194 = sadd.s32 %s192, %s193
      %s195 = smul.addr %s194, 4
      %s196 = scalar_lea.vmem %s0, %s195
      %p197 = scmp.lt.s32.totalorder %s18, 1
      %s198 = scalar_select %p197, %s18, 1
      %p199 = scmp.lt.s32.totalorder %s19, 1
      %s200 = scalar_select %p199, %s19, 1
      %s201 = smul.addr %s198, 2
      %s202 = sadd.s32 %s200, %s201
      %s203 = smul.addr %s202, 8
      %s204 = scalar_lea.vmem %s3, %s203
      %v206 = vld [vmem:[%s2] sm:$0x1]
      %v208 = vlaneseq
      %v209 = vshrl.u32 %v208, 7
      %v210 = vsub.s32 0, %v209
      %v211 = vrot.slane %v206, %v210
      %v213 = vld [vmem:[%s196] sm:$0xf]
      %v214 = vld [vmem:[%s1] sm:$0xf]
      %v215 = vld [vmem:[%s1 + $0x4] sm:$0xf]
      %v216 = vld [vmem:[%s1 + $0x8] sm:$0xf]
      %v217 = vld [vmem:[%s1 + $0xc] sm:$0xf]
      %v218 = vld [vmem:[%s1 + $0x10] sm:$0xf]
      %v219 = vld [vmem:[%s1 + $0x14] sm:$0xf]
      %v220 = vld [vmem:[%s1 + $0x18] sm:$0xf]
      %v221 = vld [vmem:[%s1 + $0x1c] sm:$0xf]
      %v222 = vld [vmem:[%s1 + $0x20] sm:$0xf]
      %v232 = vunpack.c.l.b16 %v214
      %v233 = vunpack.c.l.b16 %v215
      %v234 = vunpack.c.l.b16 %v216
      %v235 = vunpack.c.l.b16 %v217
      %v236 = vunpack.c.l.b16 %v218
      %v237 = vunpack.c.l.b16 %v219
      %v238 = vunpack.c.l.b16 %v220
      %v239 = vunpack.c.l.b16 %v221
      %v240 = vunpack.c.l.b16 %v222
      %v241 = vpack.c.b16 %v233, %v232
      %v242 = vpack.c.b16 %v235, %v234
      %v243 = vpack.c.b16 %v237, %v236
      %v244 = vpack.c.b16 %v239, %v238
      %v245 = vpack.c.b16 %v240, %v240
      %vm250 = vcmask 588800
      %v252 = vsel %vm250, %v213, 0
      %vm254 = vcmask 1043456
      %v256 = vsel %vm254, %v245, 0
      %258 = vmatprep.subr.bf16.mxu0 0
      %259 = vmatpush1.bf16.msra.mxu0 0
      %260 = vmatprep.subr.bf16.mxu0 0
      %261 = vmatpush1.bf16.msra.mxu0 0
      %262 = vmatprep.subr.bf16.mxu0 0
      %263 = vmatpush1.bf16.msra.mxu0 0
      %264 = vmatprep.subr.bf16.mxu0 0
      %265 = vmatpush1.bf16.msra.mxu0 %v256
      %266 = vmatprep.subr.bf16.mxu0 0
      %267 = vmatpush1.bf16.msra.mxu0 %v244
      %268 = vmatprep.subr.bf16.mxu0 0
      %269 = vmatpush1.bf16.msra.mxu0 %v243
      %270 = vmatprep.subr.bf16.mxu0 0
      %271 = vmatpush1.bf16.msra.mxu0 %v242
      %272 = vmatprep.subr.bf16.mxu0 0
      %273 = vmatpush1.bf16.msra.mxu0 %v241
      %274 = vmatprep.subr.bf16.mxu0 0
      %275 = vmatpush2.bf16.msra.mxu0 0
      %276 = vmatprep.subr.bf16.mxu0 0
      %277 = vmatpush2.bf16.msra.mxu0 0
      %278 = vmatprep.subr.bf16.mxu0 0
      %279 = vmatpush2.bf16.msra.mxu0 0
      %280 = vmatprep.subr.bf16.mxu0 0
      %281 = vmatpush2.bf16.msra.mxu0 0
      %282 = vmatprep.subr.bf16.mxu0 0
      %283 = vmatpush2.bf16.msra.mxu0 0
      %284 = vmatprep.subr.bf16.mxu0 0
      %285 = vmatpush2.bf16.msra.mxu0 0
      %286 = vmatprep.subr.bf16.mxu0 0
      %287 = vmatpush2.bf16.msra.mxu0 0
      %288 = vmatprep.subr.bf16.mxu0 0
      %289 = vmatpush2.bf16.msra.mxu0 0
      %290 = vmatprep.mubr.bf16.mxu0 0
      %291 = vmatmul.mubr.bf16.gmra.mxu0 %v252
      %v292 = vpop.f32.mrf.mxu0
      %v293 = vadd.f32 0.0, %v292
      %v294 = vpop.f32.mrf.mxu0
      %v295 = vpop.f32.mrf.mxu0
      %v296 = vpop.f32.mrf.mxu0
      %297 = vdwg.mxu0
      %v298 = vadd.f32 %v211, %v293
      %v299 = vld [vmem:[%s196] sm:$0xf]
      %v300 = vld [vmem:[%s196 + $0x4] sm:$0x1]
      %s301 = scalar_lea.vmem %s1, 36
      %v302 = vld [vmem:[%s301] sm:$0xf]
      %v303 = vld [vmem:[%s301 + $0x4] sm:$0xf]
      %v304 = vld [vmem:[%s301 + $0x8] sm:$0xf]
      %v305 = vld [vmem:[%s301 + $0xc] sm:$0xf]
      %v306 = vld [vmem:[%s301 + $0x10] sm:$0xf]
      %v307 = vld [vmem:[%s301 + $0x14] sm:$0xf]
      %v308 = vld [vmem:[%s301 + $0x18] sm:$0xf]
      %v309 = vld [vmem:[%s301 + $0x1c] sm:$0xf]
      %v310 = vld [vmem:[%s301 + $0x20] sm:$0xf]
      %v313 = vunpack.c.l.b16 %v299
      %v314 = vunpack.c.l.b16 %v300
      %v315 = vpack.c.b16 %v314, %v313
      %v317 = vshrl.u32 %v315, 16
      %v319 = vshll.u32 %v315, 16
      %v321 = vrot.slane %v319, 1
      %v322 = vor.u32 %v317, %v321
      %v332 = vunpack.c.l.b16 %v302
      %v333 = vunpack.c.l.b16 %v303
      %v334 = vunpack.c.l.b16 %v304
      %v335 = vunpack.c.l.b16 %v305
      %v336 = vunpack.c.l.b16 %v306
      %v337 = vunpack.c.l.b16 %v307
      %v338 = vunpack.c.l.b16 %v308
      %v339 = vunpack.c.l.b16 %v309
      %v340 = vunpack.c.l.b16 %v310
      %v341 = vpack.c.b16 %v333, %v332
      %v342 = vpack.c.b16 %v335, %v334
      %v343 = vpack.c.b16 %v337, %v336
      %v344 = vpack.c.b16 %v339, %v338
      %v345 = vpack.c.b16 %v340, %v340
      %v351 = vsel %vm250, %v322, 0
      %v354 = vsel %vm254, %v345, 0
      %356 = vmatprep.subr.bf16.mxu0 0
      %357 = vmatpush1.bf16.msra.mxu0 0
      %358 = vmatprep.subr.bf16.mxu0 0
      %359 = vmatpush1.bf16.msra.mxu0 0
      %360 = vmatprep.subr.bf16.mxu0 0
      %361 = vmatpush1.bf16.msra.mxu0 0
      %362 = vmatprep.subr.bf16.mxu0 0
      %363 = vmatpush1.bf16.msra.mxu0 %v354
      %364 = vmatprep.subr.bf16.mxu0 0
      %365 = vmatpush1.bf16.msra.mxu0 %v344
      %366 = vmatprep.subr.bf16.mxu0 0
      %367 = vmatpush1.bf16.msra.mxu0 %v343
      %368 = vmatprep.subr.bf16.mxu0 0
      %369 = vmatpush1.bf16.msra.mxu0 %v342
      %370 = vmatprep.subr.bf16.mxu0 0
      %371 = vmatpush1.bf16.msra.mxu0 %v341
      %372 = vmatprep.subr.bf16.mxu0 0
      %373 = vmatpush2.bf16.msra.mxu0 0
      %374 = vmatprep.subr.bf16.mxu0 0
      %375 = vmatpush2.bf16.msra.mxu0 0
      %376 = vmatprep.subr.bf16.mxu0 0
      %377 = vmatpush2.bf16.msra.mxu0 0
      %378 = vmatprep.subr.bf16.mxu0 0
      %379 = vmatpush2.bf16.msra.mxu0 0
      %380 = vmatprep.subr.bf16.mxu0 0
      %381 = vmatpush2.bf16.msra.mxu0 0
      %382 = vmatprep.subr.bf16.mxu0 0
      %383 = vmatpush2.bf16.msra.mxu0 0
      %384 = vmatprep.subr.bf16.mxu0 0
      %385 = vmatpush2.bf16.msra.mxu0 0
      %386 = vmatprep.subr.bf16.mxu0 0
      %387 = vmatpush2.bf16.msra.mxu0 0
      %388 = vmatprep.mubr.bf16.mxu0 0
      %389 = vmatmul.mubr.bf16.gmra.mxu0 %v351
      %v390 = vpop.f32.mrf.mxu0
      %v391 = vadd.f32 0.0, %v390
      %v392 = vpop.f32.mrf.mxu0
      %v393 = vpop.f32.mrf.mxu0
      %v394 = vpop.f32.mrf.mxu0
      %395 = vdwg.mxu0
      %v396 = vadd.f32 %v298, %v391
      %v397 = vld [vmem:[%s196] sm:$0xe]
      %s398 = scalar_lea.vmem %s1, 72
      %v399 = vld [vmem:[%s398] sm:$0xf]
      %v400 = vld [vmem:[%s398 + $0x4] sm:$0xf]
      %v401 = vld [vmem:[%s398 + $0x8] sm:$0xf]
      %v402 = vld [vmem:[%s398 + $0xc] sm:$0xf]
      %v403 = vld [vmem:[%s398 + $0x10] sm:$0xf]
      %v404 = vld [vmem:[%s398 + $0x14] sm:$0xf]
      %v405 = vld [vmem:[%s398 + $0x18] sm:$0xf]
      %v406 = vld [vmem:[%s398 + $0x1c] sm:$0xf]
      %v407 = vld [vmem:[%s398 + $0x20] sm:$0xf]
      %v409 = vunpack.c.l.b16 %v397
      %v410 = vpack.c.b16 %v314, %v409
      %v411 = vrot.slane %v410, 1
      %v421 = vunpack.c.l.b16 %v399
      %v422 = vunpack.c.l.b16 %v400
      %v423 = vunpack.c.l.b16 %v401
      %v424 = vunpack.c.l.b16 %v402
      %v425 = vunpack.c.l.b16 %v403
      %v426 = vunpack.c.l.b16 %v404
      %v427 = vunpack.c.l.b16 %v405
      %v428 = vunpack.c.l.b16 %v406
      %v429 = vunpack.c.l.b16 %v407
      %v430 = vpack.c.b16 %v422, %v421
      %v431 = vpack.c.b16 %v424, %v423
      %v432 = vpack.c.b16 %v426, %v425
      %v433 = vpack.c.b16 %v428, %v427
      %v434 = vpack.c.b16 %v429, %v429
      %v440 = vsel %vm250, %v411, 0
      %v443 = vsel %vm254, %v434, 0
      %445 = vmatprep.subr.bf16.mxu0 0
      %446 = vmatpush1.bf16.msra.mxu0 0
      %447 = vmatprep.subr.bf16.mxu0 0
      %448 = vmatpush1.bf16.msra.mxu0 0
      %449 = vmatprep.subr.bf16.mxu0 0
      %450 = vmatpush1.bf16.msra.mxu0 0
      %451 = vmatprep.subr.bf16.mxu0 0
      %452 = vmatpush1.bf16.msra.mxu0 %v443
      %453 = vmatprep.subr.bf16.mxu0 0
      %454 = vmatpush1.bf16.msra.mxu0 %v433
      %455 = vmatprep.subr.bf16.mxu0 0
      %456 = vmatpush1.bf16.msra.mxu0 %v432
      %457 = vmatprep.subr.bf16.mxu0 0
      %458 = vmatpush1.bf16.msra.mxu0 %v431
      %459 = vmatprep.subr.bf16.mxu0 0
      %460 = vmatpush1.bf16.msra.mxu0 %v430
      %461 = vmatprep.subr.bf16.mxu0 0
      %462 = vmatpush2.bf16.msra.mxu0 0
      %463 = vmatprep.subr.bf16.mxu0 0
      %464 = vmatpush2.bf16.msra.mxu0 0
      %465 = vmatprep.subr.bf16.mxu0 0
      %466 = vmatpush2.bf16.msra.mxu0 0
      %467 = vmatprep.subr.bf16.mxu0 0
      %468 = vmatpush2.bf16.msra.mxu0 0
      %469 = vmatprep.subr.bf16.mxu0 0
      %470 = vmatpush2.bf16.msra.mxu0 0
      %471 = vmatprep.subr.bf16.mxu0 0
      %472 = vmatpush2.bf16.msra.mxu0 0
      %473 = vmatprep.subr.bf16.mxu0 0
      %474 = vmatpush2.bf16.msra.mxu0 0
      %475 = vmatprep.subr.bf16.mxu0 0
      %476 = vmatpush2.bf16.msra.mxu0 0
      %477 = vmatprep.mubr.bf16.mxu0 0
      %478 = vmatmul.mubr.bf16.gmra.mxu0 %v440
      %v479 = vpop.f32.mrf.mxu0
      %v480 = vadd.f32 0.0, %v479
      %v481 = vpop.f32.mrf.mxu0
      %v482 = vpop.f32.mrf.mxu0
      %v483 = vpop.f32.mrf.mxu0
      %484 = vdwg.mxu0
      %v485 = vadd.f32 %v396, %v480
      %486 = vst [vmem:[%s204] sm:$0xff] %v485
      %p487 = scmp.lt.s32.totalorder %s18, 1
      %s488 = scalar_select %p487, %s18, 1
      %p489 = scmp.lt.s32.totalorder %s19, 1
      %s490 = scalar_select %p489, %s19, 1
      %s491 = smul.addr %s488, 2
      %s492 = sadd.s32 %s490, %s491
      %s493 = smul.addr %s492, 8
      %s494 = scalar_lea.vmem %s3, %s493
      // Predicated region
      $region33: #{convlayer_forward.1} parent=31 // pred_check
        %p495 = pneg %p116
      $region34: #{convlayer_forward.1} parent=31 // pred_check_branch
        %497 = sbr.rel (%p495) target = $region36
      $region35: #{convlayer_forward.1} parent=31 // pred_region
        _
      $region36: #{convlayer_forward.1} parent=31 // pred_fallthru
        _
    $region32: #{convlayer_forward.1} parent=5 // pred_fallthru
      _
    %p498 = scmp.le.s32.totalorder 2, %s9
    // Predicated region
    $region37: #{convlayer_forward.1} parent=5 // pred_check
      %p499 = pneg %p498
    $region38: #{convlayer_forward.1} parent=5 // pred_check_branch
      %501 = sbr.rel (%p499) target = $region40
    $region39: #{convlayer_forward.1} parent=5 // pred_region
      %s502 = ssub.s32 %s9, 2
      // Predicated region
      $region41: #{convlayer_forward.1} parent=39 // pred_check
        %p503 = pneg %p122
      $region42: #{convlayer_forward.1} parent=39 // pred_check_branch
        %505 = sbr.rel (%p503) target = $region44
      $region43: #{convlayer_forward.1} parent=39 // pred_region
        %p506 = scmp.lt.s32.totalorder %s20, 1
        %s507 = scalar_select %p506, %s20, 1
        %p508 = scmp.lt.s32.totalorder %s21, 1
        %s509 = scalar_select %p508, %s21, 1
        %s510 = smul.addr %s507, 2
        %s511 = sadd.s32 %s509, %s510
        %s512 = smul.addr %s511, 8
        %s513 = scalar_lea.vmem %s3, %s512
      $region44: #{convlayer_forward.1} parent=39 // pred_fallthru
        _
    $region40: #{convlayer_forward.1} parent=5 // pred_fallthru
      _
  $region6: #{convlayer_forward.1} parent=0 // loop_footer
    %s13 = sadd.s32 1, %s9
  $region7: #{convlayer_forward.1} parent=0 // loop_footer_branch
    %8 = sbr.rel target = $region3
  $region8: #{convlayer_forward.1} parent=0 // loop_exit
    _

</llo_original>
